<compile_context>
chip_gen: v7x
topology: tpu7x:2x2x1
jax: 0.10.0
libtpu: 0.0.40
codegen_flags: <defaults>
</compile_context>

<pallas_src>
import functools

import jax
import jax.numpy as jnp
from jax.experimental import pallas as pl
from jax.experimental.pallas import tpu as pltpu

_LANE = 128        # lane width: hidden/class compute padding
_BF16_SUB = 16     # bf16 sublane packing quantum (minimal padding for in_dim)


def _round_up(a: int, b: int) -> int:
    return (a + b - 1) // b * b


def _cdiv(a: int, b: int) -> int:
    return (a + b - 1) // b


def _leaky_relu(x, slope=0.1):
    return jnp.where(x > 0, x, slope * x)


def discriminator_kernel(x_ref, w1_ref, b1_ref, w2_ref, b2_ref, w3_ref, b3_ref,
                         o_ref, *, n_class: int):
    # x is already bf16 (cast in the jitted wrapper).
    x = x_ref[...]                                                    # (TB, in_pad) bf16

    # Linear(in, hid) + LeakyReLU(0.1)  (bf16 matmul, f32 accumulate/elementwise)
    h1 = jnp.dot(x, w1_ref[...], preferred_element_type=jnp.float32) + b1_ref[...]
    h1 = _leaky_relu(h1)

    # Linear(hid, hid) + LeakyReLU(0.1)
    h2 = jnp.dot(h1.astype(jnp.bfloat16), w2_ref[...],
                 preferred_element_type=jnp.float32) + b2_ref[...]
    h2 = _leaky_relu(h2)

    # Linear(hid, n_class) + LeakyReLU(0.1).  The matmul runs at lane-dense 128 columns
    # (padded w3 columns are zero); we slice down to the real classes BEFORE bias /
    # activation / softmax, so padded lanes never touch the softmax (no masking needed).
    l_full = jnp.dot(h2.astype(jnp.bfloat16), w3_ref[...],
                     preferred_element_type=jnp.float32)              # (TB, cls_pad) f32
    logits = _leaky_relu(l_full[:, :n_class] + b3_ref[...])           # (TB, n_class) f32

    # Numerically stable softmax over dim=1 (class axis).
    m = jnp.max(logits, axis=1, keepdims=True)
    e = jnp.exp(logits - m)
    denom = jnp.sum(e, axis=1, keepdims=True)
    o_ref[...] = (e * pl.reciprocal(denom, approx=True)).astype(o_ref.dtype)


def _discriminator_forward(x, params, n_class):
    """x: [B, in_dim] float32. params: padded/pre-transposed weights from init_params."""
    B, in_dim = x.shape
    in_pad = params["w1"].shape[0]
    hid_pad = params["w1"].shape[1]
    cls_pad = params["w3"].shape[1]

    # Batch tile: >=2 grid steps for large B (v7x megacore), big tiles for DMA amortization.
    TB = min(1024, _round_up(max(_cdiv(B, 2), 1), 16))
    B_pad = _round_up(B, TB)

    # Cast to bf16 first (half the pad/copy bytes), then pad batch + in_dim with zeros.
    x_bf = x.astype(jnp.bfloat16)
    if (B_pad, in_pad) != (B, in_dim):
        x_bf = jnp.pad(x_bf, ((0, B_pad - B), (0, in_pad - in_dim)))

    grid = (B_pad // TB,)

    x_spec = pl.BlockSpec((TB, in_pad), lambda i: (i, 0))
    out_spec = pl.BlockSpec((TB, n_class), lambda i: (i, 0))
    # Weights / biases: same block every step -> resident in VMEM across the grid.
    w1_spec = pl.BlockSpec((in_pad, hid_pad), lambda i: (0, 0))
    w2_spec = pl.BlockSpec((hid_pad, hid_pad), lambda i: (0, 0))
    w3_spec = pl.BlockSpec((hid_pad, cls_pad), lambda i: (0, 0))
    b1_spec = pl.BlockSpec((1, hid_pad), lambda i: (0, 0))
    b2_spec = pl.BlockSpec((1, hid_pad), lambda i: (0, 0))
    b3_spec = pl.BlockSpec((1, n_class), lambda i: (0, 0))

    flops = 2 * B_pad * (in_pad * hid_pad + hid_pad * hid_pad + hid_pad * cls_pad)
    transcendentals = B_pad * (n_class + 1)          # exp per real class lane + 1 recip/row
    bytes_accessed = (
        B_pad * in_pad * 2
        + (params["w1"].size + params["w2"].size + params["w3"].size) * 2
        + (params["b1"].size + params["b2"].size + params["b3"].size) * 4
        + B_pad * n_class * 4
    )

    out_padded = pl.pallas_call(
        functools.partial(discriminator_kernel, n_class=n_class),
        out_shape=jax.ShapeDtypeStruct((B_pad, n_class), jnp.float32),
        grid=grid,
        in_specs=[x_spec, w1_spec, b1_spec, w2_spec, b2_spec, w3_spec, b3_spec],
        out_specs=out_spec,
        compiler_params=pltpu.CompilerParams(
            dimension_semantics=("parallel",),
        ),
        cost_estimate=pl.CostEstimate(
            flops=flops,
            transcendentals=transcendentals,
            bytes_accessed=bytes_accessed,
        ),
    )(
        x_bf,
        params["w1"], params["b1"],
        params["w2"], params["b2"],
        params["w3"], params["b3"],
    )

    # Slice padded batch rows back off (class dim is already unpadded).
    return out_padded[:B, :]


# Whole forward under jit: pad/cast/slice fuse around the pallas_call, n_class is static.
discriminator_forward = jax.jit(_discriminator_forward, static_argnums=(2,))


def init_params(key, in_dim, hid_dim, n_class):
    """nn.Linear-style init (uniform +/- 1/sqrt(fan_in)).

    Weights are stored pre-transposed as [in, out]; in_dim is padded only to the bf16
    packing quantum (16), hidden/class compute dims to 128 lanes.  Weights are bf16 for
    the MXU, biases f32.  b3 stays unpadded [1, n_class]."""
    in_pad = _round_up(in_dim, _BF16_SUB)
    hid_pad = _round_up(hid_dim, _LANE)
    cls_pad = _round_up(n_class, _LANE)

    ks = jax.random.split(key, 6)

    def linear(kw, kb, fan_in, fan_out, fan_in_pad, fan_out_pad, bias_pad):
        bound = 1.0 / jnp.sqrt(fan_in)
        w = jax.random.uniform(kw, (fan_in, fan_out), jnp.float32, -bound, bound)
        b = jax.random.uniform(kb, (1, fan_out), jnp.float32, -bound, bound)
        w_pad = jnp.zeros((fan_in_pad, fan_out_pad), jnp.float32).at[:fan_in, :fan_out].set(w)
        b_pad = jnp.zeros((1, bias_pad), jnp.float32).at[:, :fan_out].set(b)
        return w_pad.astype(jnp.bfloat16), b_pad

    w1, b1 = linear(ks[0], ks[1], in_dim, hid_dim, in_pad, hid_pad, hid_pad)
    w2, b2 = linear(ks[2], ks[3], hid_dim, hid_dim, hid_pad, hid_pad, hid_pad)
    w3, b3 = linear(ks[4], ks[5], hid_dim, n_class, hid_pad, cls_pad, n_class)
    return {"w1": w1, "b1": b1, "w2": w2, "b2": b2, "w3": w3, "b3": b3}


def _reference_forward(x, params, in_dim, hid_dim, n_class):
    """Pure-JAX reference using the same (padded, bf16) parameters."""
    w1 = params["w1"][:in_dim, :hid_dim].astype(jnp.float32)
    b1 = params["b1"][:, :hid_dim]
    w2 = params["w2"][:hid_dim, :hid_dim].astype(jnp.float32)
    b2 = params["b2"][:, :hid_dim]
    w3 = params["w3"][:hid_dim, :n_class].astype(jnp.float32)
    b3 = params["b3"][:, :n_class]

    def leaky(v):
        return jnp.where(v > 0, v, 0.1 * v)

    xb = x.astype(jnp.bfloat16).astype(jnp.float32)
    h1 = leaky(xb @ w1 + b1)
    h2 = leaky(h1 @ w2 + b2)
    logits = leaky(h2 @ w3 + b3)
    return jax.nn.softmax(logits, axis=1)


if __name__ == "__main__":
    B, in_dim, hid_dim, n_class = 8, 32, 64, 16

    key = jax.random.PRNGKey(0)
    k_x, k_p = jax.random.split(key)
    x = jax.random.normal(k_x, (B, in_dim), dtype=jnp.float32)
    params = init_params(k_p, in_dim, hid_dim, n_class)

    out = discriminator_forward(x, params, n_class)
    out = jax.block_until_ready(out)

    assert out.shape == (B, n_class)

    # softmax rows sum to ~1 (approx reciprocal -> loose tolerance)
    row_sums = jnp.sum(out, axis=1)
    assert bool(jnp.all(jnp.abs(row_sums - 1.0) < 5e-3)), row_sums

    # compare against pure-JAX reference (same bf16 weights; tolerance covers bf16 + approx recip)
    ref = _reference_forward(x, params, in_dim, hid_dim, n_class)
    assert bool(jnp.all(jnp.abs(out - ref) < 1e-2)), jnp.max(jnp.abs(out - ref))

    print("KERNEL_OK")
</pallas_src>

<mosaic_0001>
module attributes {stable_mosaic.version = 11 : i64} {
  func.func @discriminator_kernel(%arg0: i32, %arg1: memref<16x32xbf16, #tpu.memory_space<vmem>>, %arg2: memref<32x128xbf16, #tpu.memory_space<vmem>>, %arg3: memref<1x128xf32, #tpu.memory_space<vmem>>, %arg4: memref<128x128xbf16, #tpu.memory_space<vmem>>, %arg5: memref<1x128xf32, #tpu.memory_space<vmem>>, %arg6: memref<128x128xbf16, #tpu.memory_space<vmem>>, %arg7: memref<1x16xf32, #tpu.memory_space<vmem>>, %arg8: memref<16x16xf32, #tpu.memory_space<vmem>>) attributes {dimension_semantics = [#tpu.dimension_semantics<parallel>], iteration_bounds = array<i64: 1>, scalar_prefetch = 0 : i64, scratch_operands = 0 : i64, tpu.core_type = #tpu.core_type<tc>, window_params = [{transform_indices = @transform_0, window_bounds = array<i64: 16, 32>}, {pipeline_mode = #tpu.pipeline_mode<synchronous>, transform_indices = @transform_1, window_bounds = array<i64: 32, 128>}, {pipeline_mode = #tpu.pipeline_mode<synchronous>, transform_indices = @transform_2, window_bounds = array<i64: 1, 128>}, {pipeline_mode = #tpu.pipeline_mode<synchronous>, transform_indices = @transform_3, window_bounds = array<i64: 128, 128>}, {pipeline_mode = #tpu.pipeline_mode<synchronous>, transform_indices = @transform_4, window_bounds = array<i64: 1, 128>}, {pipeline_mode = #tpu.pipeline_mode<synchronous>, transform_indices = @transform_5, window_bounds = array<i64: 128, 128>}, {pipeline_mode = #tpu.pipeline_mode<synchronous>, transform_indices = @transform_6, window_bounds = array<i64: 1, 16>}, {transform_indices = @transform_7, window_bounds = array<i64: 16, 16>}]} {
    %c0 = arith.constant 0 : index
    %c0_0 = arith.constant 0 : index
    %0 = vector.load %arg1[%c0, %c0_0] : memref<16x32xbf16, #tpu.memory_space<vmem>>, vector<16x32xbf16>
    %c0_1 = arith.constant 0 : index
    %c0_2 = arith.constant 0 : index
    %1 = vector.load %arg2[%c0_1, %c0_2] : memref<32x128xbf16, #tpu.memory_space<vmem>>, vector<32x128xbf16>
    %cst = arith.constant dense<0.000000e+00> : vector<16x128xf32>
    %2 = tpu.matmul %0, %1, %cst {dimension_numbers = #tpu.dot_dimension_numbers<[1], [0], [0], [1], [0, 0, 1, 1], [], []>} : vector<16x32xbf16>, vector<32x128xbf16>, vector<16x128xf32> -> vector<16x128xf32>
    %c0_3 = arith.constant 0 : index
    %c0_4 = arith.constant 0 : index
    %3 = vector.load %arg3[%c0_3, %c0_4] : memref<1x128xf32, #tpu.memory_space<vmem>>, vector<1x128xf32>
    %4 = vector.broadcast %3 : vector<1x128xf32> to vector<16x128xf32>
    %5 = arith.addf %2, %4 : vector<16x128xf32>
    %cst_5 = arith.constant 0.000000e+00 : f32
    %6 = vector.broadcast %cst_5 : f32 to vector<16x128xf32>
    %7 = arith.cmpf ogt, %5, %6 : vector<16x128xf32>
    %cst_6 = arith.constant 1.000000e-01 : f32
    %8 = vector.broadcast %cst_6 : f32 to vector<16x128xf32>
    %9 = arith.mulf %8, %5 : vector<16x128xf32>
    %10 = arith.select %7, %5, %9 : vector<16x128xi1>, vector<16x128xf32>
    %11 = arith.truncf %10 : vector<16x128xf32> to vector<16x128xbf16>
    %c0_7 = arith.constant 0 : index
    %c0_8 = arith.constant 0 : index
    %12 = vector.load %arg4[%c0_7, %c0_8] : memref<128x128xbf16, #tpu.memory_space<vmem>>, vector<128x128xbf16>
    %cst_9 = arith.constant dense<0.000000e+00> : vector<16x128xf32>
    %13 = tpu.matmul %11, %12, %cst_9 {dimension_numbers = #tpu.dot_dimension_numbers<[1], [0], [0], [1], [0, 0, 1, 1], [], []>} : vector<16x128xbf16>, vector<128x128xbf16>, vector<16x128xf32> -> vector<16x128xf32>
    %c0_10 = arith.constant 0 : index
    %c0_11 = arith.constant 0 : index
    %14 = vector.load %arg5[%c0_10, %c0_11] : memref<1x128xf32, #tpu.memory_space<vmem>>, vector<1x128xf32>
    %15 = vector.broadcast %14 : vector<1x128xf32> to vector<16x128xf32>
    %16 = arith.addf %13, %15 : vector<16x128xf32>
    %cst_12 = arith.constant 0.000000e+00 : f32
    %17 = vector.broadcast %cst_12 : f32 to vector<16x128xf32>
    %18 = arith.cmpf ogt, %16, %17 : vector<16x128xf32>
    %cst_13 = arith.constant 1.000000e-01 : f32
    %19 = vector.broadcast %cst_13 : f32 to vector<16x128xf32>
    %20 = arith.mulf %19, %16 : vector<16x128xf32>
    %21 = arith.select %18, %16, %20 : vector<16x128xi1>, vector<16x128xf32>
    %22 = arith.truncf %21 : vector<16x128xf32> to vector<16x128xbf16>
    %c0_14 = arith.constant 0 : index
    %c0_15 = arith.constant 0 : index
    %23 = vector.load %arg6[%c0_14, %c0_15] : memref<128x128xbf16, #tpu.memory_space<vmem>>, vector<128x128xbf16>
    %cst_16 = arith.constant dense<0.000000e+00> : vector<16x128xf32>
    %24 = tpu.matmul %22, %23, %cst_16 {dimension_numbers = #tpu.dot_dimension_numbers<[1], [0], [0], [1], [0, 0, 1, 1], [], []>} : vector<16x128xbf16>, vector<128x128xbf16>, vector<16x128xf32> -> vector<16x128xf32>
    %25 = vector.extract_strided_slice %24 {offsets = [0, 0], sizes = [16, 16], strides = [1, 1]} : vector<16x128xf32> to vector<16x16xf32>
    %c0_17 = arith.constant 0 : index
    %c0_18 = arith.constant 0 : index
    %26 = vector.load %arg7[%c0_17, %c0_18] : memref<1x16xf32, #tpu.memory_space<vmem>>, vector<1x16xf32>
    %27 = vector.broadcast %26 : vector<1x16xf32> to vector<16x16xf32>
    %28 = arith.addf %25, %27 : vector<16x16xf32>
    %cst_19 = arith.constant 0.000000e+00 : f32
    %29 = vector.broadcast %cst_19 : f32 to vector<16x16xf32>
    %30 = arith.cmpf ogt, %28, %29 : vector<16x16xf32>
    %cst_20 = arith.constant 1.000000e-01 : f32
    %31 = vector.broadcast %cst_20 : f32 to vector<16x16xf32>
    %32 = arith.mulf %31, %28 : vector<16x16xf32>
    %33 = arith.select %30, %28, %32 : vector<16x16xi1>, vector<16x16xf32>
    %cst_21 = arith.constant dense<0xFF800000> : vector<16xf32>
    %34 = vector.multi_reduction <maximumf>, %33, %cst_21 [1] : vector<16x16xf32> to vector<16xf32>
    %35 = vector.shape_cast %34 : vector<16xf32> to vector<16x1xf32>
    %36 = vector.broadcast %35 : vector<16x1xf32> to vector<16x16xf32>
    %37 = arith.subf %33, %36 : vector<16x16xf32>
    %38 = math.exp %37 : vector<16x16xf32>
    %cst_22 = arith.constant dense<0.000000e+00> : vector<16xf32>
    %39 = vector.multi_reduction <add>, %38, %cst_22 [1] : vector<16x16xf32> to vector<16xf32>
    %40 = vector.shape_cast %39 : vector<16xf32> to vector<16x1xf32>
    %41 = tpu.reciprocal %40 {approx = true} : vector<16x1xf32> -> vector<16x1xf32>
    %42 = vector.broadcast %41 : vector<16x1xf32> to vector<16x16xf32>
    %43 = arith.mulf %38, %42 : vector<16x16xf32>
    %c0_23 = arith.constant 0 : index
    %c0_24 = arith.constant 0 : index
    %44 = vector.load %arg8[%c0_23, %c0_24] : memref<16x16xf32, #tpu.memory_space<vmem>>, vector<16x16xf32>
    tpu.vector_store %arg8[%c0_23, %c0_24], %43 {strides = array<i32>} : memref<16x16xf32, #tpu.memory_space<vmem>>, vector<16x16xf32>,
    return
  }
  func.func @transform_0(%arg0: i32) -> (i32, i32) {
    %c0_i32 = arith.constant 0 : i32
    %c0_i32_0 = arith.constant 0 : i32
    return %arg0, %c0_i32 : i32, i32
  }
  func.func @transform_1(%arg0: i32) -> (i32, i32) {
    %c0_i32 = arith.constant 0 : i32
    %c0_i32_0 = arith.constant 0 : i32
    %c0_i32_1 = arith.constant 0 : i32
    return %c0_i32, %c0_i32_0 : i32, i32
  }
  func.func @transform_2(%arg0: i32) -> (i32, i32) {
    %c0_i32 = arith.constant 0 : i32
    %c0_i32_0 = arith.constant 0 : i32
    %c0_i32_1 = arith.constant 0 : i32
    return %c0_i32, %c0_i32_0 : i32, i32
  }
  func.func @transform_3(%arg0: i32) -> (i32, i32) {
    %c0_i32 = arith.constant 0 : i32
    %c0_i32_0 = arith.constant 0 : i32
    %c0_i32_1 = arith.constant 0 : i32
    return %c0_i32, %c0_i32_0 : i32, i32
  }
  func.func @transform_4(%arg0: i32) -> (i32, i32) {
    %c0_i32 = arith.constant 0 : i32
    %c0_i32_0 = arith.constant 0 : i32
    %c0_i32_1 = arith.constant 0 : i32
    return %c0_i32, %c0_i32_0 : i32, i32
  }
  func.func @transform_5(%arg0: i32) -> (i32, i32) {
    %c0_i32 = arith.constant 0 : i32
    %c0_i32_0 = arith.constant 0 : i32
    %c0_i32_1 = arith.constant 0 : i32
    return %c0_i32, %c0_i32_0 : i32, i32
  }
  func.func @transform_6(%arg0: i32) -> (i32, i32) {
    %c0_i32 = arith.constant 0 : i32
    %c0_i32_0 = arith.constant 0 : i32
    %c0_i32_1 = arith.constant 0 : i32
    return %c0_i32, %c0_i32_0 : i32, i32
  }
  func.func @transform_7(%arg0: i32) -> (i32, i32) {
    %c0_i32 = arith.constant 0 : i32
    %c0_i32_0 = arith.constant 0 : i32
    return %arg0, %c0_i32 : i32, i32
  }
}

</mosaic_0001>

<llo_original>
// kernel: _discriminator_forward.1
$region0: #{_discriminator_forward.1}
  #allocation0 [shape = 'u32[]', space=smem, size = 0x4, offset = 0x4, fixed_abs, tag = 'smem constant byte address 0x4 - core index']
  #allocation1 [shape = 'u32[144,128]{1,0:T(1,128)}', space=vmem, size = 0x12000, scoped, tag = 'internal scratch']
  %s0 = inlined_call_operand.vmem [shape: bf16[16,32], index: 0, kind: input, shape index: {}]
  %s1 = inlined_call_operand.vmem [shape: bf16[32,128], index: 1, kind: input, shape index: {}]
  %s2 = inlined_call_operand.vmem [shape: f32[1,128], index: 2, kind: input, shape index: {}]
  %s3 = inlined_call_operand.hbm [shape: bf16[128,128], index: 3, kind: input, shape index: {}]
  %s4 = inlined_call_operand.vmem [shape: f32[1,128], index: 4, kind: input, shape index: {}]
  %s5 = inlined_call_operand.hbm [shape: bf16[128,128], index: 5, kind: input, shape index: {}]
  %s6 = inlined_call_operand.vmem [shape: f32[1,16], index: 6, kind: input, shape index: {}]
  %s7 = inlined_call_operand.vmem [shape: f32[16,16], index: 7, kind: output, shape index: {}]
  %s8 = sld [smem:[#allocation0]]
  $region46: #{_discriminator_forward.1} parent=0
    _
  %s10 = ssub.s32 1, %s8
  %s11 = scalar_select 0, %s10, %s8
  $region1: #{_discriminator_forward.1} parent=0
    #allocation2 [shape = 'u8[32768]{0}', space=vmem, size = 0x8000, scoped, tag = 'input window, operand 3, single buffered']
    #allocation3 [shape = 's32[1]{0}', space=sflag, size = 0x4, scoped, tag = 'scoped memory for _discriminator_forward.1']
    #allocation4 [shape = 'u8[32768]{0}', space=vmem, size = 0x8000, scoped, tag = 'input window, operand 5, single buffered']
    #allocation5 [shape = 's32[1]{0}', space=sflag, size = 0x4, scoped, tag = 'scoped memory for _discriminator_forward.1']
    %12 = vsyncpa [#allocation3], 0
    %13 = vsyncpa [#allocation5], 0
    // Predicated region
    $region2: #{_discriminator_forward.1} parent=1 // pred_check
      _
    $region3: #{_discriminator_forward.1} parent=1 // pred_check_branch
      %15 = sbr.rel (0) target = $region5
    $region4: #{_discriminator_forward.1} parent=1 // pred_region
      _
    $region5: #{_discriminator_forward.1} parent=1 // pred_fallthru
      _
    // Predicated region
    $region6: #{_discriminator_forward.1} parent=1 // pred_check
      _
    $region7: #{_discriminator_forward.1} parent=1 // pred_check_branch
      %17 = sbr.rel (0) target = $region9
    $region8: #{_discriminator_forward.1} parent=1 // pred_region
      _
    $region9: #{_discriminator_forward.1} parent=1 // pred_fallthru
      _
    // Predicated region
    $region10: #{_discriminator_forward.1} parent=1 // pred_check
      _
    $region11: #{_discriminator_forward.1} parent=1 // pred_check_branch
      %19 = sbr.rel (0) target = $region13
    $region12: #{_discriminator_forward.1} parent=1 // pred_region
      _
    $region13: #{_discriminator_forward.1} parent=1 // pred_fallthru
      _
    // Predicated region
    $region14: #{_discriminator_forward.1} parent=1 // pred_check
      _
    $region15: #{_discriminator_forward.1} parent=1 // pred_check_branch
      %21 = sbr.rel (0) target = $region17
    $region16: #{_discriminator_forward.1} parent=1 // pred_region
      %s23 = ssub.s32 1024, 1024
      %24 = vsyncadd [#allocation3], %s23
      %s25 = sshll.u32 [#allocation2], 4
      %s26 = int_to_ptr.vmem [resolvable:$true] %s25
      %31 = dma.hbm_to_vmem [thread:$0]  %s3, 1024, %s26, [#allocation3], 64, 64, 4
    $region17: #{_discriminator_forward.1} parent=1 // pred_fallthru
      _
    // Predicated region
    $region18: #{_discriminator_forward.1} parent=1 // pred_check
      _
    $region19: #{_discriminator_forward.1} parent=1 // pred_check_branch
      %33 = sbr.rel (0) target = $region21
    $region20: #{_discriminator_forward.1} parent=1 // pred_region
      _
    $region21: #{_discriminator_forward.1} parent=1 // pred_fallthru
      _
    // Predicated region
    $region22: #{_discriminator_forward.1} parent=1 // pred_check
      _
    $region23: #{_discriminator_forward.1} parent=1 // pred_check_branch
      %35 = sbr.rel (0) target = $region25
    $region24: #{_discriminator_forward.1} parent=1 // pred_region
      %s37 = ssub.s32 1024, 1024
      %38 = vsyncadd [#allocation5], %s37
      %s39 = sshll.u32 [#allocation4], 4
      %s40 = int_to_ptr.vmem [resolvable:$true] %s39
      %45 = dma.hbm_to_vmem [thread:$0]  %s5, 1024, %s40, [#allocation5], 64, 64, 4
    $region25: #{_discriminator_forward.1} parent=1 // pred_fallthru
      _
    // Predicated region
    $region26: #{_discriminator_forward.1} parent=1 // pred_check
      _
    $region27: #{_discriminator_forward.1} parent=1 // pred_check_branch
      %47 = sbr.rel (0) target = $region29
    $region28: #{_discriminator_forward.1} parent=1 // pred_region
      _
    $region29: #{_discriminator_forward.1} parent=1 // pred_fallthru
      _
    // Predicated region
    $region30: #{_discriminator_forward.1} parent=1 // pred_check
      _
    $region31: #{_discriminator_forward.1} parent=1 // pred_check_branch
      %49 = sbr.rel (0) target = $region33
    $region32: #{_discriminator_forward.1} parent=1 // pred_region
      %50 = dma.done [#allocation3], 1024
    $region33: #{_discriminator_forward.1} parent=1 // pred_fallthru
      _
    // Predicated region
    $region34: #{_discriminator_forward.1} parent=1 // pred_check
      _
    $region35: #{_discriminator_forward.1} parent=1 // pred_check_branch
      %52 = sbr.rel (0) target = $region37
    $region36: #{_discriminator_forward.1} parent=1 // pred_region
      %53 = dma.done [#allocation5], 1024
    $region37: #{_discriminator_forward.1} parent=1 // pred_fallthru
      _
    %v55 = vld [vmem:[%s0] sm:$0xf]
    %v56 = vld [vmem:[%s0 + $0x4] sm:$0xf]
    %v57 = vld [vmem:[%s1] sm:$0xf]
    %v58 = vld [vmem:[%s1 + $0x4] sm:$0xf]
    %v59 = vld [vmem:[%s1 + $0x8] sm:$0xf]
    %v60 = vld [vmem:[%s1 + $0xc] sm:$0xf]
    %v61 = vld [vmem:[%s2] sm:$0x1]
    %v63 = vlaneseq
    %v64 = vshrl.u32 %v63, 7
    %v65 = vsub.s32 0, %v64
    %v66 = vrot.slane %v61, %v65
    %v70 = vunpack.c.l.b16 %v55
    %v71 = vunpack.c.l.b16 %v56
    %v72 = vpack.c.b16 %v71, %v70
    %v77 = vunpack.c.l.b16 %v57
    %v78 = vunpack.c.l.b16 %v58
    %v79 = vunpack.c.l.b16 %v59
    %v80 = vunpack.c.l.b16 %v60
    %v81 = vpack.c.b16 %v78, %v77
    %v82 = vpack.c.b16 %v80, %v79
    %vm85 = vcmask 261120
    %v87 = vsel %vm85, %v72, 0
    %89 = vmatprep.subr.bf16.mxu0 0
    %90 = vmatpush1.bf16.msra.mxu0 %v81
    %91 = vmatprep.subr.bf16.mxu0 0
    %92 = vmatpush1.bf16.msra.mxu0 %v82
    %93 = vmatprep.subr.bf16.mxu0 0
    %94 = vmatpush1.bf16.msra.mxu0 0
    %95 = vmatprep.subr.bf16.mxu0 0
    %96 = vmatpush1.bf16.msra.mxu0 0
    %97 = vmatprep.subr.bf16.mxu0 0
    %98 = vmatpush1.bf16.msra.mxu0 0
    %99 = vmatprep.subr.bf16.mxu0 0
    %100 = vmatpush1.bf16.msra.mxu0 0
    %101 = vmatprep.subr.bf16.mxu0 0
    %102 = vmatpush1.bf16.msra.mxu0 0
    %103 = vmatprep.subr.bf16.mxu0 0
    %104 = vmatpush1.bf16.msra.mxu0 0
    %105 = vmatprep.subr.bf16.mxu0 0
    %106 = vmatpush1.bf16.msra.mxu0 0
    %107 = vmatprep.subr.bf16.mxu0 0
    %108 = vmatpush1.bf16.msra.mxu0 0
    %109 = vmatprep.subr.bf16.mxu0 0
    %110 = vmatpush1.bf16.msra.mxu0 0
    %111 = vmatprep.subr.bf16.mxu0 0
    %112 = vmatpush1.bf16.msra.mxu0 0
    %113 = vmatprep.subr.bf16.mxu0 0
    %114 = vmatpush1.bf16.msra.mxu0 0
    %115 = vmatprep.subr.bf16.mxu0 0
    %116 = vmatpush1.bf16.msra.mxu0 0
    %117 = vmatprep.subr.bf16.mxu0 0
    %118 = vmatpush1.bf16.msra.mxu0 0
    %119 = vmatprep.subr.bf16.mxu0 0
    %120 = vmatpush1.bf16.msra.mxu0 0
    %121 = vmatprep.mubr.bf16.mxu0 0
    %122 = vmatmul.mubr.bf16.gmra.mrb[0].mxu0 %v87
    %v123 = vpop.f32.mrb[0].mxu0
    %v124 = vadd.f32 %v66, %v123
    %v125 = vpop.f32.mrb[0].mxu0
    %v126 = vpop.f32.mrb[0].mxu0
    %v127 = vadd.f32 %v66, %v126
    %v128 = vpop.f32.mrb[0].mxu0
    %129 = vdwg.mxu0
    %vm130 = vcmp.gt.f32.partialorder %v124, 0.0
    %vm131 = vcmp.gt.f32.partialorder %v127, 0.0
    %v132 = vmul.f32 %v124, 0.1
    %v133 = vmul.f32 %v127, 0.1
    %v134 = vsel %vm130, %v124, %v132
    %v135 = vsel %vm131, %v127, %v133
    %v136 = vpack.c.bf16 %v135, %v134
    %v137 = vld [vmem:[#allocation2] sm:$0xf]
    %v138 = vld [vmem:[#allocation2 + $0x4] sm:$0xf]
    %v139 = vld [vmem:[#allocation2 + $0x8] sm:$0xf]
    %v140 = vld [vmem:[#allocation2 + $0xc] sm:$0xf]
    %v141 = vld [vmem:[#allocation2 + $0x10] sm:$0xf]
    %v142 = vld [vmem:[#allocation2 + $0x14] sm:$0xf]
    %v143 = vld [vmem:[#allocation2 + $0x18] sm:$0xf]
    %v144 = vld [vmem:[#allocation2 + $0x1c] sm:$0xf]
    %v145 = vld [vmem:[#allocation2 + $0x20] sm:$0xf]
    %v146 = vld [vmem:[#allocation2 + $0x24] sm:$0xf]
    %v147 = vld [vmem:[#allocation2 + $0x28] sm:$0xf]
    %v148 = vld [vmem:[#allocation2 + $0x2c] sm:$0xf]
    %v149 = vld [vmem:[#allocation2 + $0x30] sm:$0xf]
    %v150 = vld [vmem:[#allocation2 + $0x34] sm:$0xf]
    %v151 = vld [vmem:[#allocation2 + $0x38] sm:$0xf]
    %v152 = vld [vmem:[#allocation2 + $0x3c] sm:$0xf]
    %v153 = vld [vmem:[%s4] sm:$0x1]
    %v155 = vlaneseq
    %v156 = vshrl.u32 %v155, 7
    %v157 = vsub.s32 0, %v156
    %v158 = vrot.slane %v153, %v157
    %v176 = vunpack.c.l.b16 %v137
    %v177 = vunpack.c.l.b16 %v138
    %v178 = vunpack.c.l.b16 %v139
    %v179 = vunpack.c.l.b16 %v140
    %v180 = vunpack.c.l.b16 %v141
    %v181 = vunpack.c.l.b16 %v142
    %v182 = vunpack.c.l.b16 %v143
    %v183 = vunpack.c.l.b16 %v144
    %v184 = vunpack.c.l.b16 %v145
    %v185 = vunpack.c.l.b16 %v146
    %v186 = vunpack.c.l.b16 %v147
    %v187 = vunpack.c.l.b16 %v148
    %v188 = vunpack.c.l.b16 %v149
    %v189 = vunpack.c.l.b16 %v150
    %v190 = vunpack.c.l.b16 %v151
    %v191 = vunpack.c.l.b16 %v152
    %v192 = vpack.c.b16 %v177, %v176
    %v193 = vpack.c.b16 %v179, %v178
    %v194 = vpack.c.b16 %v181, %v180
    %v195 = vpack.c.b16 %v183, %v182
    %v196 = vpack.c.b16 %v185, %v184
    %v197 = vpack.c.b16 %v187, %v186
    %v198 = vpack.c.b16 %v189, %v188
    %v199 = vpack.c.b16 %v191, %v190
    %208 = vmatprep.subr.bf16.mxu0 0
    %209 = vmatpush1.bf16.msra.mxu0 %v192
    %210 = vmatprep.subr.bf16.mxu0 0
    %211 = vmatpush1.bf16.msra.mxu0 %v193
    %212 = vmatprep.subr.bf16.mxu0 0
    %213 = vmatpush1.bf16.msra.mxu0 %v194
    %214 = vmatprep.subr.bf16.mxu0 0
    %215 = vmatpush1.bf16.msra.mxu0 %v195
    %216 = vmatprep.subr.bf16.mxu0 0
    %217 = vmatpush1.bf16.msra.mxu0 %v196
    %218 = vmatprep.subr.bf16.mxu0 0
    %219 = vmatpush1.bf16.msra.mxu0 %v197
    %220 = vmatprep.subr.bf16.mxu0 0
    %221 = vmatpush1.bf16.msra.mxu0 %v198
    %222 = vmatprep.subr.bf16.mxu0 0
    %223 = vmatpush1.bf16.msra.mxu0 %v199
    %224 = vmatprep.subr.bf16.mxu0 0
    %225 = vmatpush1.bf16.msra.mxu0 0
    %226 = vmatprep.subr.bf16.mxu0 0
    %227 = vmatpush1.bf16.msra.mxu0 0
    %228 = vmatprep.subr.bf16.mxu0 0
    %229 = vmatpush1.bf16.msra.mxu0 0
    %230 = vmatprep.subr.bf16.mxu0 0
    %231 = vmatpush1.bf16.msra.mxu0 0
    %232 = vmatprep.subr.bf16.mxu0 0
    %233 = vmatpush1.bf16.msra.mxu0 0
    %234 = vmatprep.subr.bf16.mxu0 0
    %235 = vmatpush1.bf16.msra.mxu0 0
    %236 = vmatprep.subr.bf16.mxu0 0
    %237 = vmatpush1.bf16.msra.mxu0 0
    %238 = vmatprep.subr.bf16.mxu0 0
    %239 = vmatpush1.bf16.msra.mxu0 0
    %240 = vmatprep.mubr.bf16.mxu0 0
    %241 = vmatmul.mubr.bf16.gmra.mrb[0].mxu0 %v136
    %v242 = vpop.f32.mrb[0].mxu0
    %v243 = vadd.f32 %v158, %v242
    %v244 = vpop.f32.mrb[0].mxu0
    %v245 = vpop.f32.mrb[0].mxu0
    %v246 = vadd.f32 %v158, %v245
    %v247 = vpop.f32.mrb[0].mxu0
    %248 = vdwg.mxu0
    %vm249 = vcmp.gt.f32.partialorder %v243, 0.0
    %vm250 = vcmp.gt.f32.partialorder %v246, 0.0
    %v251 = vmul.f32 %v243, 0.1
    %v252 = vmul.f32 %v246, 0.1
    %v253 = vsel %vm249, %v243, %v251
    %v254 = vsel %vm250, %v246, %v252
    %v255 = vpack.c.bf16 %v254, %v253
    %v256 = vld [vmem:[#allocation4] sm:$0xf]
    %v257 = vld [vmem:[#allocation4 + $0x4] sm:$0xf]
    %v258 = vld [vmem:[#allocation4 + $0x8] sm:$0xf]
    %v259 = vld [vmem:[#allocation4 + $0xc] sm:$0xf]
    %v260 = vld [vmem:[#allocation4 + $0x10] sm:$0xf]
    %v261 = vld [vmem:[#allocation4 + $0x14] sm:$0xf]
    %v262 = vld [vmem:[#allocation4 + $0x18] sm:$0xf]
    %v263 = vld [vmem:[#allocation4 + $0x1c] sm:$0xf]
    %v264 = vld [vmem:[#allocation4 + $0x20] sm:$0xf]
    %v265 = vld [vmem:[#allocation4 + $0x24] sm:$0xf]
    %v266 = vld [vmem:[#allocation4 + $0x28] sm:$0xf]
    %v267 = vld [vmem:[#allocation4 + $0x2c] sm:$0xf]
    %v268 = vld [vmem:[#allocation4 + $0x30] sm:$0xf]
    %v269 = vld [vmem:[#allocation4 + $0x34] sm:$0xf]
    %v270 = vld [vmem:[#allocation4 + $0x38] sm:$0xf]
    %v271 = vld [vmem:[#allocation4 + $0x3c] sm:$0xf]
    %v288 = vunpack.c.l.b16 %v256
    %v289 = vunpack.c.l.b16 %v257
    %v290 = vunpack.c.l.b16 %v258
    %v291 = vunpack.c.l.b16 %v259
    %v292 = vunpack.c.l.b16 %v260
    %v293 = vunpack.c.l.b16 %v261
    %v294 = vunpack.c.l.b16 %v262
    %v295 = vunpack.c.l.b16 %v263
    %v296 = vunpack.c.l.b16 %v264
    %v297 = vunpack.c.l.b16 %v265
    %v298 = vunpack.c.l.b16 %v266
    %v299 = vunpack.c.l.b16 %v267
    %v300 = vunpack.c.l.b16 %v268
    %v301 = vunpack.c.l.b16 %v269
    %v302 = vunpack.c.l.b16 %v270
    %v303 = vunpack.c.l.b16 %v271
    %v304 = vpack.c.b16 %v289, %v288
    %v305 = vpack.c.b16 %v291, %v290
    %v306 = vpack.c.b16 %v293, %v292
    %v307 = vpack.c.b16 %v295, %v294
    %v308 = vpack.c.b16 %v297, %v296
    %v309 = vpack.c.b16 %v299, %v298
    %v310 = vpack.c.b16 %v301, %v300
    %v311 = vpack.c.b16 %v303, %v302
    %320 = vmatprep.subr.bf16.mxu0 0
    %321 = vmatpush1.bf16.msra.mxu0 %v304
    %322 = vmatprep.subr.bf16.mxu0 0
    %323 = vmatpush1.bf16.msra.mxu0 %v305
    %324 = vmatprep.subr.bf16.mxu0 0
    %325 = vmatpush1.bf16.msra.mxu0 %v306
    %326 = vmatprep.subr.bf16.mxu0 0
    %327 = vmatpush1.bf16.msra.mxu0 %v307
    %328 = vmatprep.subr.bf16.mxu0 0
    %329 = vmatpush1.bf16.msra.mxu0 %v308
    %330 = vmatprep.subr.bf16.mxu0 0
    %331 = vmatpush1.bf16.msra.mxu0 %v309
    %332 = vmatprep.subr.bf16.mxu0 0
    %333 = vmatpush1.bf16.msra.mxu0 %v310
    %334 = vmatprep.subr.bf16.mxu0 0
    %335 = vmatpush1.bf16.msra.mxu0 %v311
    %336 = vmatprep.subr.bf16.mxu0 0
    %337 = vmatpush1.bf16.msra.mxu0 0
    %338 = vmatprep.subr.bf16.mxu0 0
    %339 = vmatpush1.bf16.msra.mxu0 0
    %340 = vmatprep.subr.bf16.mxu0 0
    %341 = vmatpush1.bf16.msra.mxu0 0
    %342 = vmatprep.subr.bf16.mxu0 0
    %343 = vmatpush1.bf16.msra.mxu0 0
    %344 = vmatprep.subr.bf16.mxu0 0
    %345 = vmatpush1.bf16.msra.mxu0 0
    %346 = vmatprep.subr.bf16.mxu0 0
    %347 = vmatpush1.bf16.msra.mxu0 0
    %348 = vmatprep.subr.bf16.mxu0 0
    %349 = vmatpush1.bf16.msra.mxu0 0
    %350 = vmatprep.subr.bf16.mxu0 0
    %351 = vmatpush1.bf16.msra.mxu0 0
    %352 = vmatprep.mubr.bf16.mxu0 0
    %353 = vmatmul.mubr.bf16.gmra.mrb[0].mxu0 %v255
    %v354 = vpop.f32.mrb[0].mxu0
    %v355 = vadd.f32 0.0, %v354
    %v356 = vpop.f32.mrb[0].mxu0
    %v357 = vpop.f32.mrb[0].mxu0
    %v358 = vadd.f32 0.0, %v357
    %v359 = vpop.f32.mrb[0].mxu0
    %360 = vdwg.mxu0
    %v361 = vld [vmem:[%s6] sm:$0x1]
    %v363 = vlaneseq
    %v364 = vshrl.u32 %v363, 7
    %v365 = vsub.s32 0, %v364
    %v366 = vrot.slane %v361, %v365
    %v368 = vadd.f32 %v355, %v366
    %v369 = vadd.f32 %v358, %v366
    %vm370 = vcmp.gt.f32.partialorder %v368, 0.0
    %vm371 = vcmp.gt.f32.partialorder %v369, 0.0
    %v372 = vmul.f32 %v368, 0.1
    %v373 = vmul.f32 %v369, 0.1
    %v374 = vsel %vm370, %v368, %v372
    %v375 = vsel %vm371, %v369, %v373
    %vm376 = vcmask 130048
    %v377 = vsel %vm376, %v374, -inf
    %378 = vmax.xlane.f32.xlu0 %v377
    %v379 = vpop.xlane.xlu0 %378
    %v380 = vsel %vm376, %v375, -inf
    %381 = vmax.xlane.f32.xlu0 %v380
    %v382 = vpop.xlane.xlu0 %381
    %v383 = vsub.f32 %v374, %v379
    %v384 = vsub.f32 %v375, %v382
    %v385 = vmul.f32 %v383, 1.442695
    %v386 = vpow.pop %v385
    %v387 = vmul.f32 %v384, 1.442695
    %v388 = vpow.pop %v387
    %v389 = vsel %vm376, %v386, 0.0
    %390 = vadd.xlane.f32.xlu0 %v389
    %v391 = vpop.xlane.xlu0 %390
    %v392 = vsel %vm376, %v388, 0.0
    %393 = vadd.xlane.f32.xlu0 %v392
    %v394 = vpop.xlane.xlu0 %393
    %v395 = vrcp.pop %v391
    %v396 = vrcp.pop %v394
    %v397 = vmul.f32 %v386, %v395
    %v398 = vmul.f32 %v388, %v396
    %399 = vst.msk [vmem:[%s7] sm:$0xff] %vm376, %v397
    %400 = vst.msk [vmem:[%s7 + $0x8] sm:$0xff] %vm376, %v398
    // Predicated region
    $region38: #{_discriminator_forward.1} parent=1 // pred_check
      _
    $region39: #{_discriminator_forward.1} parent=1 // pred_check_branch
      %402 = sbr.rel (0) target = $region41
    $region40: #{_discriminator_forward.1} parent=1 // pred_region
      _
    $region41: #{_discriminator_forward.1} parent=1 // pred_fallthru
      _
    // Predicated region
    $region42: #{_discriminator_forward.1} parent=1 // pred_check
      _
    $region43: #{_discriminator_forward.1} parent=1 // pred_check_branch
      %404 = sbr.rel (0) target = $region45
    $region44: #{_discriminator_forward.1} parent=1 // pred_region
      _
    $region45: #{_discriminator_forward.1} parent=1 // pred_fallthru
      _
    %405 = vsyncpa [#allocation3], 1
    %406 = vsyncpa [#allocation5], 1

</llo_original>
